<compile_context>
chip_gen: v7x
topology: tpu7x:2x2x1
jax: 0.10.0
libtpu: 0.0.40
codegen_flags: <defaults>
</compile_context>

<pallas_src>
from functools import partial

import jax
import jax.numpy as jnp
from jax.experimental import pallas as pl
from jax.experimental.pallas import tpu as pltpu


def _symmetry_groups(kernel_reach: int):
    """Group kernel taps (kh, kw) by squared distance from the kernel center.

    The radial GENEO kernel value depends only on distance from the center, so
    every tap in a group shares one coefficient.  Static (trace-time) property
    of kernel_reach only.
    """
    r = kernel_reach
    by_d2 = {}
    for kh in range(2 * r + 1):
        for kw in range(2 * r + 1):
            dy, dx = kh - r, kw - r
            by_d2.setdefault(dy * dy + dx * dx, []).append((kh, kw))
    d2s = sorted(by_d2)
    return tuple(d2s), tuple(tuple(by_d2[d]) for d in d2s)


def _geneo_conv_kernel(coef_ref, col_ref, x_ref, o_ref, *,
                       groups, W, L, Lp, KH, KW):
    """One (Bt, Lp) lane-dense batch block per grid step.

    coef_ref : (n_groups,) f32 SMEM  -- one coefficient per distance group
    col_ref  : (1, Lp)     i32 VMEM  -- column index j of each flattened lane
    x_ref    : (Bt, Lp)    f32 VMEM  -- flattened (H*W, zero tail-padded) input
    o_ref    : (Bt, Lp)    f32 VMEM  -- flattened output
    """
    ph, pw = KH // 2, KW // 2
    x = x_ref[...].astype(jnp.float32)

    # Boundary-mask ingredients: tiny (1, Lp) vectors hoisted out of the tap
    # loops; they sublane-broadcast against the (Bt, Lp) block inside where().
    lane = jax.lax.broadcasted_iota(jnp.int32, (1, Lp), 1)   # flattened index p
    col = col_ref[...]                                        # p % W (from host)

    # For each tap (dy, dx): out[p] += k * x[p + s], s = dy*W + dx, provided the
    # source pixel (i+dy, j+dx) lies inside the image.  The shift is a static
    # pltpu.roll (XLU); validity reduces to at most two lane comparisons:
    #   column:  j + dx in [0, W)   ->  col >= -dx   (dx<0)  /  col < W-dx (dx>0)
    #   row:     p + s  in [0, H*W) ->  lane >= -s   (dy<0)  /  lane < L-s (dy>0)
    acc = None
    for g, taps in enumerate(groups):
        psum = None
        for kh, kw in taps:
            dy, dx = kh - ph, kw - pw
            s = dy * W + dx
            # jnp.roll convention: roll(x, -s)[p] == x[p + s]; keep shift >= 0.
            rolled = x if s == 0 else pltpu.roll(x, (-s) % Lp, axis=1)
            conds = []
            if dx < 0:
                conds.append(col >= -dx)
            elif dx > 0:
                conds.append(col < W - dx)
            if dy < 0:
                conds.append(lane >= -s)
            elif dy > 0:
                conds.append(lane < L - s)
            if conds:
                valid = conds[0]
                for c in conds[1:]:
                    valid = valid & c
                contrib = jnp.where(valid, rolled, 0.0)
            else:
                contrib = rolled                       # center tap: no mask
            psum = contrib if psum is None else psum + contrib
        term = psum * coef_ref[g]                      # one SMEM-scalar mul/group
        acc = term if acc is None else acc + term      # acc init = first group
    o_ref[...] = acc.astype(o_ref.dtype)


class GENEOOperator:
    """JAX/Pallas re-implementation of GENEO_Operator (radial-Gaussian GIB)."""

    def __init__(self, kernel_reach: int = 2, radius: float = 1.0, sigma: float = 1.5):
        self.kernel_reach = int(kernel_reach)
        # Deterministic parameter init (mirrors nn.ParameterDict of scalars).
        self.geneo_params = {
            "radius": jnp.asarray(radius, dtype=jnp.float32),
            "sigma": jnp.asarray(sigma, dtype=jnp.float32),
        }
        self._d2s, self._groups = _symmetry_groups(self.kernel_reach)

    def compute_group_coeffs(self) -> jnp.ndarray:
        """One normalized Gaussian coefficient per distinct tap distance."""
        d = jnp.sqrt(jnp.asarray(self._d2s, dtype=jnp.float32))
        radius = self.geneo_params["radius"]
        sigma = self.geneo_params["sigma"]
        g = jnp.exp(-((d - radius) ** 2) / (2.0 * sigma * sigma))
        counts = jnp.asarray([len(t) for t in self._groups], dtype=jnp.float32)
        return (g / jnp.sum(g * counts)).astype(jnp.float32)   # kernel sums to 1

    def compute_kernel(self) -> jnp.ndarray:
        """Full (KH, KW) GENEO kernel (scattered from the group coefficients)."""
        ksz = 2 * self.kernel_reach + 1
        coeffs = self.compute_group_coeffs()
        k = jnp.zeros((ksz, ksz), jnp.float32)
        for g, taps in enumerate(self._groups):
            for kh, kw in taps:
                k = k.at[kh, kw].set(coeffs[g])
        return k

    @staticmethod
    def _pick_batch_block(B: int, Lp: int, itemsize: int = 4,
                          budget_bytes: int = 4 << 20) -> int:
        """Batch rows per grid step.

        Keeps the (Bt, Lp) input block near `budget_bytes` (sized for v7x's
        64 MiB VMEM together with the explicit vmem_limit below; raise on
        128-MiB v5e/v6e if the trace shows exposed DMA), keeps Bt a multiple of
        8 whenever the batch axis is tiled (sublane alignment), and keeps >=2
        grid steps when B permits so the 'parallel' axis shards across both
        v7x TensorCores.
        """
        max_bt = max(1, budget_bytes // max(1, Lp * itemsize))
        if B <= 8:
            # Sub-8 batches cannot be tiled without breaking (8,128) sublane
            # alignment: take the whole batch in one block.
            # TODO(synk): H-strip grid axis for B<=8 large scenes (see header).
            return B
        bt = max(8, (min(B, max_bt) // 8) * 8)
        half = ((B + 1) // 2 + 7) // 8 * 8          # cdiv(B,2), 8-aligned
        return min(bt, max(8, half))

    def __call__(self, x: jnp.ndarray) -> jnp.ndarray:
        # x: (B, 1, H, W) NCHW
        B, C, H, W = x.shape
        assert C == 1, "GENEO operator acts on a single input channel"
        KH = KW = 2 * self.kernel_reach + 1
        L = H * W
        Lp = ((L + 127) // 128) * 128               # lane-dense, 128-aligned

        coeffs = self.compute_group_coeffs()

        # Flatten spatial dims onto the lane axis (free: contiguous reshape).
        x2 = x[:, 0].reshape(B, L)
        if Lp != L:
            # Tiny tail pad (< 512 B per image), NOT a KH/KW halo copy.
            x2 = jnp.pad(x2, ((0, 0), (0, Lp - L)))

        # Per-lane column index j = p % W, fetched into VMEM once (constant
        # block index), used in-kernel for the kw boundary masks.
        col_ids = (jnp.arange(Lp, dtype=jnp.int32) % W).reshape(1, Lp)

        Bt = self._pick_batch_block(B, Lp, x2.dtype.itemsize)
        grid = (pl.cdiv(B, Bt),)                    # ragged last block is fine

        out = pl.pallas_call(
            partial(_geneo_conv_kernel, groups=self._groups,
                    W=W, L=L, Lp=Lp, KH=KH, KW=KW),
            out_shape=jax.ShapeDtypeStruct((B, Lp), x.dtype),
            grid_spec=pltpu.PrefetchScalarGridSpec(
                num_scalar_prefetch=0,
                grid=grid,
                in_specs=[
                    # group coefficients: scalar reads from SMEM
                    pl.BlockSpec(memory_space=pltpu.MemorySpace.SMEM),
                    # column indices: same block every step -> fetched once
                    pl.BlockSpec((1, Lp), lambda b: (0, 0)),
                    # lane-dense input batch block
                    pl.BlockSpec((Bt, Lp), lambda b: (b, 0)),
                ],
                out_specs=pl.BlockSpec((Bt, Lp), lambda b: (b, 0)),
            ),
            compiler_params=pltpu.CompilerParams(
                dimension_semantics=("parallel",),
                vmem_limit_bytes=48 * 1024 * 1024,   # headroom under v7x 64 MiB
            ),
        )(coeffs, col_ids, x2)

        if Lp != L:
            out = out[:, :L]
        return out.reshape(B, 1, H, W)               # back to NCHW


if __name__ == "__main__":
    key = jax.random.PRNGKey(0)
    B, C, H, W = 2, 1, 16, 16
    x = jax.random.normal(key, (B, C, H, W), dtype=jnp.float32)

    op = GENEOOperator(kernel_reach=2, radius=1.0, sigma=1.5)
    y = jax.block_until_ready(op(x))

    # Reference: XLA cross-correlation == F.conv2d(x, k.view(1,1,kh,kw), padding='same')
    k = op.compute_kernel()[None, None]  # (1, 1, KH, KW)
    y_ref = jax.lax.conv_general_dilated(
        x, k, window_strides=(1, 1), padding="SAME",
        dimension_numbers=("NCHW", "OIHW", "NCHW"),
    )
    assert y.shape == (B, C, H, W)
    assert jnp.allclose(y, y_ref, atol=1e-4, rtol=1e-4)

    print("KERNEL_OK")
</pallas_src>

<mosaic_0001>
module attributes {stable_mosaic.version = 11 : i64} {
  func.func @_geneo_conv_kernel(%arg0: i32, %arg1: memref<6xf32, #tpu.memory_space<smem>>, %arg2: memref<1x256xi32, #tpu.memory_space<vmem>>, %arg3: memref<2x256xf32, #tpu.memory_space<vmem>>, %arg4: memref<2x256xf32, #tpu.memory_space<vmem>>) attributes {dimension_semantics = [#tpu.dimension_semantics<parallel>], iteration_bounds = array<i64: 1>, scalar_prefetch = 0 : i64, scratch_operands = 0 : i64, tpu.core_type = #tpu.core_type<tc>, window_params = [{transform_indices = @transform_0, window_bounds = array<i64: 6>}, {pipeline_mode = #tpu.pipeline_mode<synchronous>, transform_indices = @transform_1, window_bounds = array<i64: 1, 256>}, {transform_indices = @transform_2, window_bounds = array<i64: 2, 256>}, {transform_indices = @transform_3, window_bounds = array<i64: 2, 256>}]} {
    %c0 = arith.constant 0 : index
    %c0_0 = arith.constant 0 : index
    %0 = vector.load %arg3[%c0, %c0_0] : memref<2x256xf32, #tpu.memory_space<vmem>>, vector<2x256xf32>
    %1 = tpu.iota {dimensions = array<i32: 1>} : vector<1x256xi32>
    %c0_1 = arith.constant 0 : index
    %c0_2 = arith.constant 0 : index
    %2 = vector.load %arg2[%c0_1, %c0_2] : memref<1x256xi32, #tpu.memory_space<vmem>>, vector<1x256xi32>
    %c0_3 = arith.constant 0 : index
    %3 = memref.load %arg1[%c0_3] : memref<6xf32, #tpu.memory_space<smem>>
    %4 = vector.broadcast %3 : f32 to vector<2x256xf32>
    %5 = arith.mulf %0, %4 : vector<2x256xf32>
    %c16_i32 = arith.constant 16 : i32
    %6 = tpu.dynamic_rotate %0 by %c16_i32 dim 1 : vector<2x256xf32>, i32 -> vector<2x256xf32>
    %c16_i32_4 = arith.constant 16 : i32
    %7 = vector.broadcast %c16_i32_4 : i32 to vector<1x256xi32>
    %8 = arith.cmpi sge, %1, %7 : vector<1x256xi32>
    %cst = arith.constant 0.000000e+00 : f32
    %9 = vector.shape_cast %8 : vector<1x256xi1> to vector<1x256xi1>
    %10 = vector.broadcast %9 : vector<1x256xi1> to vector<2x256xi1>
    %11 = vector.broadcast %cst : f32 to vector<2x256xf32>
    %12 = arith.select %10, %6, %11 : vector<2x256xi1>, vector<2x256xf32>
    %c1_i32 = arith.constant 1 : i32
    %13 = tpu.dynamic_rotate %0 by %c1_i32 dim 1 : vector<2x256xf32>, i32 -> vector<2x256xf32>
    %c1_i32_5 = arith.constant 1 : i32
    %14 = vector.broadcast %c1_i32_5 : i32 to vector<1x256xi32>
    %15 = arith.cmpi sge, %2, %14 : vector<1x256xi32>
    %cst_6 = arith.constant 0.000000e+00 : f32
    %16 = vector.shape_cast %15 : vector<1x256xi1> to vector<1x256xi1>
    %17 = vector.broadcast %16 : vector<1x256xi1> to vector<2x256xi1>
    %18 = vector.broadcast %cst_6 : f32 to vector<2x256xf32>
    %19 = arith.select %17, %13, %18 : vector<2x256xi1>, vector<2x256xf32>
    %20 = arith.addf %12, %19 : vector<2x256xf32>
    %c255_i32 = arith.constant 255 : i32
    %21 = tpu.dynamic_rotate %0 by %c255_i32 dim 1 : vector<2x256xf32>, i32 -> vector<2x256xf32>
    %c15_i32 = arith.constant 15 : i32
    %22 = vector.broadcast %c15_i32 : i32 to vector<1x256xi32>
    %23 = arith.cmpi slt, %2, %22 : vector<1x256xi32>
    %cst_7 = arith.constant 0.000000e+00 : f32
    %24 = vector.shape_cast %23 : vector<1x256xi1> to vector<1x256xi1>
    %25 = vector.broadcast %24 : vector<1x256xi1> to vector<2x256xi1>
    %26 = vector.broadcast %cst_7 : f32 to vector<2x256xf32>
    %27 = arith.select %25, %21, %26 : vector<2x256xi1>, vector<2x256xf32>
    %28 = arith.addf %20, %27 : vector<2x256xf32>
    %c240_i32 = arith.constant 240 : i32
    %29 = tpu.dynamic_rotate %0 by %c240_i32 dim 1 : vector<2x256xf32>, i32 -> vector<2x256xf32>
    %c240_i32_8 = arith.constant 240 : i32
    %30 = vector.broadcast %c240_i32_8 : i32 to vector<1x256xi32>
    %31 = arith.cmpi slt, %1, %30 : vector<1x256xi32>
    %cst_9 = arith.constant 0.000000e+00 : f32
    %32 = vector.shape_cast %31 : vector<1x256xi1> to vector<1x256xi1>
    %33 = vector.broadcast %32 : vector<1x256xi1> to vector<2x256xi1>
    %34 = vector.broadcast %cst_9 : f32 to vector<2x256xf32>
    %35 = arith.select %33, %29, %34 : vector<2x256xi1>, vector<2x256xf32>
    %36 = arith.addf %28, %35 : vector<2x256xf32>
    %c1 = arith.constant 1 : index
    %37 = memref.load %arg1[%c1] : memref<6xf32, #tpu.memory_space<smem>>
    %38 = vector.broadcast %37 : f32 to vector<2x256xf32>
    %39 = arith.mulf %36, %38 : vector<2x256xf32>
    %40 = arith.addf %5, %39 : vector<2x256xf32>
    %c17_i32 = arith.constant 17 : i32
    %41 = tpu.dynamic_rotate %0 by %c17_i32 dim 1 : vector<2x256xf32>, i32 -> vector<2x256xf32>
    %c1_i32_10 = arith.constant 1 : i32
    %42 = vector.broadcast %c1_i32_10 : i32 to vector<1x256xi32>
    %43 = arith.cmpi sge, %2, %42 : vector<1x256xi32>
    %c17_i32_11 = arith.constant 17 : i32
    %44 = vector.broadcast %c17_i32_11 : i32 to vector<1x256xi32>
    %45 = arith.cmpi sge, %1, %44 : vector<1x256xi32>
    %46 = arith.andi %43, %45 : vector<1x256xi1>
    %cst_12 = arith.constant 0.000000e+00 : f32
    %47 = vector.shape_cast %46 : vector<1x256xi1> to vector<1x256xi1>
    %48 = vector.broadcast %47 : vector<1x256xi1> to vector<2x256xi1>
    %49 = vector.broadcast %cst_12 : f32 to vector<2x256xf32>
    %50 = arith.select %48, %41, %49 : vector<2x256xi1>, vector<2x256xf32>
    %c15_i32_13 = arith.constant 15 : i32
    %51 = tpu.dynamic_rotate %0 by %c15_i32_13 dim 1 : vector<2x256xf32>, i32 -> vector<2x256xf32>
    %c15_i32_14 = arith.constant 15 : i32
    %52 = vector.broadcast %c15_i32_14 : i32 to vector<1x256xi32>
    %53 = arith.cmpi slt, %2, %52 : vector<1x256xi32>
    %c15_i32_15 = arith.constant 15 : i32
    %54 = vector.broadcast %c15_i32_15 : i32 to vector<1x256xi32>
    %55 = arith.cmpi sge, %1, %54 : vector<1x256xi32>
    %56 = arith.andi %53, %55 : vector<1x256xi1>
    %cst_16 = arith.constant 0.000000e+00 : f32
    %57 = vector.shape_cast %56 : vector<1x256xi1> to vector<1x256xi1>
    %58 = vector.broadcast %57 : vector<1x256xi1> to vector<2x256xi1>
    %59 = vector.broadcast %cst_16 : f32 to vector<2x256xf32>
    %60 = arith.select %58, %51, %59 : vector<2x256xi1>, vector<2x256xf32>
    %61 = arith.addf %50, %60 : vector<2x256xf32>
    %c241_i32 = arith.constant 241 : i32
    %62 = tpu.dynamic_rotate %0 by %c241_i32 dim 1 : vector<2x256xf32>, i32 -> vector<2x256xf32>
    %c1_i32_17 = arith.constant 1 : i32
    %63 = vector.broadcast %c1_i32_17 : i32 to vector<1x256xi32>
    %64 = arith.cmpi sge, %2, %63 : vector<1x256xi32>
    %c241_i32_18 = arith.constant 241 : i32
    %65 = vector.broadcast %c241_i32_18 : i32 to vector<1x256xi32>
    %66 = arith.cmpi slt, %1, %65 : vector<1x256xi32>
    %67 = arith.andi %64, %66 : vector<1x256xi1>
    %cst_19 = arith.constant 0.000000e+00 : f32
    %68 = vector.shape_cast %67 : vector<1x256xi1> to vector<1x256xi1>
    %69 = vector.broadcast %68 : vector<1x256xi1> to vector<2x256xi1>
    %70 = vector.broadcast %cst_19 : f32 to vector<2x256xf32>
    %71 = arith.select %69, %62, %70 : vector<2x256xi1>, vector<2x256xf32>
    %72 = arith.addf %61, %71 : vector<2x256xf32>
    %c239_i32 = arith.constant 239 : i32
    %73 = tpu.dynamic_rotate %0 by %c239_i32 dim 1 : vector<2x256xf32>, i32 -> vector<2x256xf32>
    %c15_i32_20 = arith.constant 15 : i32
    %74 = vector.broadcast %c15_i32_20 : i32 to vector<1x256xi32>
    %75 = arith.cmpi slt, %2, %74 : vector<1x256xi32>
    %c239_i32_21 = arith.constant 239 : i32
    %76 = vector.broadcast %c239_i32_21 : i32 to vector<1x256xi32>
    %77 = arith.cmpi slt, %1, %76 : vector<1x256xi32>
    %78 = arith.andi %75, %77 : vector<1x256xi1>
    %cst_22 = arith.constant 0.000000e+00 : f32
    %79 = vector.shape_cast %78 : vector<1x256xi1> to vector<1x256xi1>
    %80 = vector.broadcast %79 : vector<1x256xi1> to vector<2x256xi1>
    %81 = vector.broadcast %cst_22 : f32 to vector<2x256xf32>
    %82 = arith.select %80, %73, %81 : vector<2x256xi1>, vector<2x256xf32>
    %83 = arith.addf %72, %82 : vector<2x256xf32>
    %c2 = arith.constant 2 : index
    %84 = memref.load %arg1[%c2] : memref<6xf32, #tpu.memory_space<smem>>
    %85 = vector.broadcast %84 : f32 to vector<2x256xf32>
    %86 = arith.mulf %83, %85 : vector<2x256xf32>
    %87 = arith.addf %40, %86 : vector<2x256xf32>
    %c32_i32 = arith.constant 32 : i32
    %88 = tpu.dynamic_rotate %0 by %c32_i32 dim 1 : vector<2x256xf32>, i32 -> vector<2x256xf32>
    %c32_i32_23 = arith.constant 32 : i32
    %89 = vector.broadcast %c32_i32_23 : i32 to vector<1x256xi32>
    %90 = arith.cmpi sge, %1, %89 : vector<1x256xi32>
    %cst_24 = arith.constant 0.000000e+00 : f32
    %91 = vector.shape_cast %90 : vector<1x256xi1> to vector<1x256xi1>
    %92 = vector.broadcast %91 : vector<1x256xi1> to vector<2x256xi1>
    %93 = vector.broadcast %cst_24 : f32 to vector<2x256xf32>
    %94 = arith.select %92, %88, %93 : vector<2x256xi1>, vector<2x256xf32>
    %c2_i32 = arith.constant 2 : i32
    %95 = tpu.dynamic_rotate %0 by %c2_i32 dim 1 : vector<2x256xf32>, i32 -> vector<2x256xf32>
    %c2_i32_25 = arith.constant 2 : i32
    %96 = vector.broadcast %c2_i32_25 : i32 to vector<1x256xi32>
    %97 = arith.cmpi sge, %2, %96 : vector<1x256xi32>
    %cst_26 = arith.constant 0.000000e+00 : f32
    %98 = vector.shape_cast %97 : vector<1x256xi1> to vector<1x256xi1>
    %99 = vector.broadcast %98 : vector<1x256xi1> to vector<2x256xi1>
    %100 = vector.broadcast %cst_26 : f32 to vector<2x256xf32>
    %101 = arith.select %99, %95, %100 : vector<2x256xi1>, vector<2x256xf32>
    %102 = arith.addf %94, %101 : vector<2x256xf32>
    %c254_i32 = arith.constant 254 : i32
    %103 = tpu.dynamic_rotate %0 by %c254_i32 dim 1 : vector<2x256xf32>, i32 -> vector<2x256xf32>
    %c14_i32 = arith.constant 14 : i32
    %104 = vector.broadcast %c14_i32 : i32 to vector<1x256xi32>
    %105 = arith.cmpi slt, %2, %104 : vector<1x256xi32>
    %cst_27 = arith.constant 0.000000e+00 : f32
    %106 = vector.shape_cast %105 : vector<1x256xi1> to vector<1x256xi1>
    %107 = vector.broadcast %106 : vector<1x256xi1> to vector<2x256xi1>
    %108 = vector.broadcast %cst_27 : f32 to vector<2x256xf32>
    %109 = arith.select %107, %103, %108 : vector<2x256xi1>, vector<2x256xf32>
    %110 = arith.addf %102, %109 : vector<2x256xf32>
    %c224_i32 = arith.constant 224 : i32
    %111 = tpu.dynamic_rotate %0 by %c224_i32 dim 1 : vector<2x256xf32>, i32 -> vector<2x256xf32>
    %c224_i32_28 = arith.constant 224 : i32
    %112 = vector.broadcast %c224_i32_28 : i32 to vector<1x256xi32>
    %113 = arith.cmpi slt, %1, %112 : vector<1x256xi32>
    %cst_29 = arith.constant 0.000000e+00 : f32
    %114 = vector.shape_cast %113 : vector<1x256xi1> to vector<1x256xi1>
    %115 = vector.broadcast %114 : vector<1x256xi1> to vector<2x256xi1>
    %116 = vector.broadcast %cst_29 : f32 to vector<2x256xf32>
    %117 = arith.select %115, %111, %116 : vector<2x256xi1>, vector<2x256xf32>
    %118 = arith.addf %110, %117 : vector<2x256xf32>
    %c3 = arith.constant 3 : index
    %119 = memref.load %arg1[%c3] : memref<6xf32, #tpu.memory_space<smem>>
    %120 = vector.broadcast %119 : f32 to vector<2x256xf32>
    %121 = arith.mulf %118, %120 : vector<2x256xf32>
    %122 = arith.addf %87, %121 : vector<2x256xf32>
    %c33_i32 = arith.constant 33 : i32
    %123 = tpu.dynamic_rotate %0 by %c33_i32 dim 1 : vector<2x256xf32>, i32 -> vector<2x256xf32>
    %c1_i32_30 = arith.constant 1 : i32
    %124 = vector.broadcast %c1_i32_30 : i32 to vector<1x256xi32>
    %125 = arith.cmpi sge, %2, %124 : vector<1x256xi32>
    %c33_i32_31 = arith.constant 33 : i32
    %126 = vector.broadcast %c33_i32_31 : i32 to vector<1x256xi32>
    %127 = arith.cmpi sge, %1, %126 : vector<1x256xi32>
    %128 = arith.andi %125, %127 : vector<1x256xi1>
    %cst_32 = arith.constant 0.000000e+00 : f32
    %129 = vector.shape_cast %128 : vector<1x256xi1> to vector<1x256xi1>
    %130 = vector.broadcast %129 : vector<1x256xi1> to vector<2x256xi1>
    %131 = vector.broadcast %cst_32 : f32 to vector<2x256xf32>
    %132 = arith.select %130, %123, %131 : vector<2x256xi1>, vector<2x256xf32>
    %c31_i32 = arith.constant 31 : i32
    %133 = tpu.dynamic_rotate %0 by %c31_i32 dim 1 : vector<2x256xf32>, i32 -> vector<2x256xf32>
    %c15_i32_33 = arith.constant 15 : i32
    %134 = vector.broadcast %c15_i32_33 : i32 to vector<1x256xi32>
    %135 = arith.cmpi slt, %2, %134 : vector<1x256xi32>
    %c31_i32_34 = arith.constant 31 : i32
    %136 = vector.broadcast %c31_i32_34 : i32 to vector<1x256xi32>
    %137 = arith.cmpi sge, %1, %136 : vector<1x256xi32>
    %138 = arith.andi %135, %137 : vector<1x256xi1>
    %cst_35 = arith.constant 0.000000e+00 : f32
    %139 = vector.shape_cast %138 : vector<1x256xi1> to vector<1x256xi1>
    %140 = vector.broadcast %139 : vector<1x256xi1> to vector<2x256xi1>
    %141 = vector.broadcast %cst_35 : f32 to vector<2x256xf32>
    %142 = arith.select %140, %133, %141 : vector<2x256xi1>, vector<2x256xf32>
    %143 = arith.addf %132, %142 : vector<2x256xf32>
    %c18_i32 = arith.constant 18 : i32
    %144 = tpu.dynamic_rotate %0 by %c18_i32 dim 1 : vector<2x256xf32>, i32 -> vector<2x256xf32>
    %c2_i32_36 = arith.constant 2 : i32
    %145 = vector.broadcast %c2_i32_36 : i32 to vector<1x256xi32>
    %146 = arith.cmpi sge, %2, %145 : vector<1x256xi32>
    %c18_i32_37 = arith.constant 18 : i32
    %147 = vector.broadcast %c18_i32_37 : i32 to vector<1x256xi32>
    %148 = arith.cmpi sge, %1, %147 : vector<1x256xi32>
    %149 = arith.andi %146, %148 : vector<1x256xi1>
    %cst_38 = arith.constant 0.000000e+00 : f32
    %150 = vector.shape_cast %149 : vector<1x256xi1> to vector<1x256xi1>
    %151 = vector.broadcast %150 : vector<1x256xi1> to vector<2x256xi1>
    %152 = vector.broadcast %cst_38 : f32 to vector<2x256xf32>
    %153 = arith.select %151, %144, %152 : vector<2x256xi1>, vector<2x256xf32>
    %154 = arith.addf %143, %153 : vector<2x256xf32>
    %c14_i32_39 = arith.constant 14 : i32
    %155 = tpu.dynamic_rotate %0 by %c14_i32_39 dim 1 : vector<2x256xf32>, i32 -> vector<2x256xf32>
    %c14_i32_40 = arith.constant 14 : i32
    %156 = vector.broadcast %c14_i32_40 : i32 to vector<1x256xi32>
    %157 = arith.cmpi slt, %2, %156 : vector<1x256xi32>
    %c14_i32_41 = arith.constant 14 : i32
    %158 = vector.broadcast %c14_i32_41 : i32 to vector<1x256xi32>
    %159 = arith.cmpi sge, %1, %158 : vector<1x256xi32>
    %160 = arith.andi %157, %159 : vector<1x256xi1>
    %cst_42 = arith.constant 0.000000e+00 : f32
    %161 = vector.shape_cast %160 : vector<1x256xi1> to vector<1x256xi1>
    %162 = vector.broadcast %161 : vector<1x256xi1> to vector<2x256xi1>
    %163 = vector.broadcast %cst_42 : f32 to vector<2x256xf32>
    %164 = arith.select %162, %155, %163 : vector<2x256xi1>, vector<2x256xf32>
    %165 = arith.addf %154, %164 : vector<2x256xf32>
    %c242_i32 = arith.constant 242 : i32
    %166 = tpu.dynamic_rotate %0 by %c242_i32 dim 1 : vector<2x256xf32>, i32 -> vector<2x256xf32>
    %c2_i32_43 = arith.constant 2 : i32
    %167 = vector.broadcast %c2_i32_43 : i32 to vector<1x256xi32>
    %168 = arith.cmpi sge, %2, %167 : vector<1x256xi32>
    %c242_i32_44 = arith.constant 242 : i32
    %169 = vector.broadcast %c242_i32_44 : i32 to vector<1x256xi32>
    %170 = arith.cmpi slt, %1, %169 : vector<1x256xi32>
    %171 = arith.andi %168, %170 : vector<1x256xi1>
    %cst_45 = arith.constant 0.000000e+00 : f32
    %172 = vector.shape_cast %171 : vector<1x256xi1> to vector<1x256xi1>
    %173 = vector.broadcast %172 : vector<1x256xi1> to vector<2x256xi1>
    %174 = vector.broadcast %cst_45 : f32 to vector<2x256xf32>
    %175 = arith.select %173, %166, %174 : vector<2x256xi1>, vector<2x256xf32>
    %176 = arith.addf %165, %175 : vector<2x256xf32>
    %c238_i32 = arith.constant 238 : i32
    %177 = tpu.dynamic_rotate %0 by %c238_i32 dim 1 : vector<2x256xf32>, i32 -> vector<2x256xf32>
    %c14_i32_46 = arith.constant 14 : i32
    %178 = vector.broadcast %c14_i32_46 : i32 to vector<1x256xi32>
    %179 = arith.cmpi slt, %2, %178 : vector<1x256xi32>
    %c238_i32_47 = arith.constant 238 : i32
    %180 = vector.broadcast %c238_i32_47 : i32 to vector<1x256xi32>
    %181 = arith.cmpi slt, %1, %180 : vector<1x256xi32>
    %182 = arith.andi %179, %181 : vector<1x256xi1>
    %cst_48 = arith.constant 0.000000e+00 : f32
    %183 = vector.shape_cast %182 : vector<1x256xi1> to vector<1x256xi1>
    %184 = vector.broadcast %183 : vector<1x256xi1> to vector<2x256xi1>
    %185 = vector.broadcast %cst_48 : f32 to vector<2x256xf32>
    %186 = arith.select %184, %177, %185 : vector<2x256xi1>, vector<2x256xf32>
    %187 = arith.addf %176, %186 : vector<2x256xf32>
    %c225_i32 = arith.constant 225 : i32
    %188 = tpu.dynamic_rotate %0 by %c225_i32 dim 1 : vector<2x256xf32>, i32 -> vector<2x256xf32>
    %c1_i32_49 = arith.constant 1 : i32
    %189 = vector.broadcast %c1_i32_49 : i32 to vector<1x256xi32>
    %190 = arith.cmpi sge, %2, %189 : vector<1x256xi32>
    %c225_i32_50 = arith.constant 225 : i32
    %191 = vector.broadcast %c225_i32_50 : i32 to vector<1x256xi32>
    %192 = arith.cmpi slt, %1, %191 : vector<1x256xi32>
    %193 = arith.andi %190, %192 : vector<1x256xi1>
    %cst_51 = arith.constant 0.000000e+00 : f32
    %194 = vector.shape_cast %193 : vector<1x256xi1> to vector<1x256xi1>
    %195 = vector.broadcast %194 : vector<1x256xi1> to vector<2x256xi1>
    %196 = vector.broadcast %cst_51 : f32 to vector<2x256xf32>
    %197 = arith.select %195, %188, %196 : vector<2x256xi1>, vector<2x256xf32>
    %198 = arith.addf %187, %197 : vector<2x256xf32>
    %c223_i32 = arith.constant 223 : i32
    %199 = tpu.dynamic_rotate %0 by %c223_i32 dim 1 : vector<2x256xf32>, i32 -> vector<2x256xf32>
    %c15_i32_52 = arith.constant 15 : i32
    %200 = vector.broadcast %c15_i32_52 : i32 to vector<1x256xi32>
    %201 = arith.cmpi slt, %2, %200 : vector<1x256xi32>
    %c223_i32_53 = arith.constant 223 : i32
    %202 = vector.broadcast %c223_i32_53 : i32 to vector<1x256xi32>
    %203 = arith.cmpi slt, %1, %202 : vector<1x256xi32>
    %204 = arith.andi %201, %203 : vector<1x256xi1>
    %cst_54 = arith.constant 0.000000e+00 : f32
    %205 = vector.shape_cast %204 : vector<1x256xi1> to vector<1x256xi1>
    %206 = vector.broadcast %205 : vector<1x256xi1> to vector<2x256xi1>
    %207 = vector.broadcast %cst_54 : f32 to vector<2x256xf32>
    %208 = arith.select %206, %199, %207 : vector<2x256xi1>, vector<2x256xf32>
    %209 = arith.addf %198, %208 : vector<2x256xf32>
    %c4 = arith.constant 4 : index
    %210 = memref.load %arg1[%c4] : memref<6xf32, #tpu.memory_space<smem>>
    %211 = vector.broadcast %210 : f32 to vector<2x256xf32>
    %212 = arith.mulf %209, %211 : vector<2x256xf32>
    %213 = arith.addf %122, %212 : vector<2x256xf32>
    %c34_i32 = arith.constant 34 : i32
    %214 = tpu.dynamic_rotate %0 by %c34_i32 dim 1 : vector<2x256xf32>, i32 -> vector<2x256xf32>
    %c2_i32_55 = arith.constant 2 : i32
    %215 = vector.broadcast %c2_i32_55 : i32 to vector<1x256xi32>
    %216 = arith.cmpi sge, %2, %215 : vector<1x256xi32>
    %c34_i32_56 = arith.constant 34 : i32
    %217 = vector.broadcast %c34_i32_56 : i32 to vector<1x256xi32>
    %218 = arith.cmpi sge, %1, %217 : vector<1x256xi32>
    %219 = arith.andi %216, %218 : vector<1x256xi1>
    %cst_57 = arith.constant 0.000000e+00 : f32
    %220 = vector.shape_cast %219 : vector<1x256xi1> to vector<1x256xi1>
    %221 = vector.broadcast %220 : vector<1x256xi1> to vector<2x256xi1>
    %222 = vector.broadcast %cst_57 : f32 to vector<2x256xf32>
    %223 = arith.select %221, %214, %222 : vector<2x256xi1>, vector<2x256xf32>
    %c30_i32 = arith.constant 30 : i32
    %224 = tpu.dynamic_rotate %0 by %c30_i32 dim 1 : vector<2x256xf32>, i32 -> vector<2x256xf32>
    %c14_i32_58 = arith.constant 14 : i32
    %225 = vector.broadcast %c14_i32_58 : i32 to vector<1x256xi32>
    %226 = arith.cmpi slt, %2, %225 : vector<1x256xi32>
    %c30_i32_59 = arith.constant 30 : i32
    %227 = vector.broadcast %c30_i32_59 : i32 to vector<1x256xi32>
    %228 = arith.cmpi sge, %1, %227 : vector<1x256xi32>
    %229 = arith.andi %226, %228 : vector<1x256xi1>
    %cst_60 = arith.constant 0.000000e+00 : f32
    %230 = vector.shape_cast %229 : vector<1x256xi1> to vector<1x256xi1>
    %231 = vector.broadcast %230 : vector<1x256xi1> to vector<2x256xi1>
    %232 = vector.broadcast %cst_60 : f32 to vector<2x256xf32>
    %233 = arith.select %231, %224, %232 : vector<2x256xi1>, vector<2x256xf32>
    %234 = arith.addf %223, %233 : vector<2x256xf32>
    %c226_i32 = arith.constant 226 : i32
    %235 = tpu.dynamic_rotate %0 by %c226_i32 dim 1 : vector<2x256xf32>, i32 -> vector<2x256xf32>
    %c2_i32_61 = arith.constant 2 : i32
    %236 = vector.broadcast %c2_i32_61 : i32 to vector<1x256xi32>
    %237 = arith.cmpi sge, %2, %236 : vector<1x256xi32>
    %c226_i32_62 = arith.constant 226 : i32
    %238 = vector.broadcast %c226_i32_62 : i32 to vector<1x256xi32>
    %239 = arith.cmpi slt, %1, %238 : vector<1x256xi32>
    %240 = arith.andi %237, %239 : vector<1x256xi1>
    %cst_63 = arith.constant 0.000000e+00 : f32
    %241 = vector.shape_cast %240 : vector<1x256xi1> to vector<1x256xi1>
    %242 = vector.broadcast %241 : vector<1x256xi1> to vector<2x256xi1>
    %243 = vector.broadcast %cst_63 : f32 to vector<2x256xf32>
    %244 = arith.select %242, %235, %243 : vector<2x256xi1>, vector<2x256xf32>
    %245 = arith.addf %234, %244 : vector<2x256xf32>
    %c222_i32 = arith.constant 222 : i32
    %246 = tpu.dynamic_rotate %0 by %c222_i32 dim 1 : vector<2x256xf32>, i32 -> vector<2x256xf32>
    %c14_i32_64 = arith.constant 14 : i32
    %247 = vector.broadcast %c14_i32_64 : i32 to vector<1x256xi32>
    %248 = arith.cmpi slt, %2, %247 : vector<1x256xi32>
    %c222_i32_65 = arith.constant 222 : i32
    %249 = vector.broadcast %c222_i32_65 : i32 to vector<1x256xi32>
    %250 = arith.cmpi slt, %1, %249 : vector<1x256xi32>
    %251 = arith.andi %248, %250 : vector<1x256xi1>
    %cst_66 = arith.constant 0.000000e+00 : f32
    %252 = vector.shape_cast %251 : vector<1x256xi1> to vector<1x256xi1>
    %253 = vector.broadcast %252 : vector<1x256xi1> to vector<2x256xi1>
    %254 = vector.broadcast %cst_66 : f32 to vector<2x256xf32>
    %255 = arith.select %253, %246, %254 : vector<2x256xi1>, vector<2x256xf32>
    %256 = arith.addf %245, %255 : vector<2x256xf32>
    %c5 = arith.constant 5 : index
    %257 = memref.load %arg1[%c5] : memref<6xf32, #tpu.memory_space<smem>>
    %258 = vector.broadcast %257 : f32 to vector<2x256xf32>
    %259 = arith.mulf %256, %258 : vector<2x256xf32>
    %260 = arith.addf %213, %259 : vector<2x256xf32>
    %c0_67 = arith.constant 0 : index
    %c0_68 = arith.constant 0 : index
    %261 = vector.load %arg4[%c0_67, %c0_68] : memref<2x256xf32, #tpu.memory_space<vmem>>, vector<2x256xf32>
    tpu.vector_store %arg4[%c0_67, %c0_68], %260 {strides = array<i32>} : memref<2x256xf32, #tpu.memory_space<vmem>>, vector<2x256xf32>,
    return
  }
  func.func @transform_0(%arg0: i32) -> i32 {
    %c0_i32 = arith.constant 0 : i32
    %c0_i32_0 = arith.constant 0 : i32
    return %c0_i32 : i32
  }
  func.func @transform_1(%arg0: i32) -> (i32, i32) {
    %c0_i32 = arith.constant 0 : i32
    %c0_i32_0 = arith.constant 0 : i32
    %c0_i32_1 = arith.constant 0 : i32
    return %c0_i32, %c0_i32_0 : i32, i32
  }
  func.func @transform_2(%arg0: i32) -> (i32, i32) {
    %c0_i32 = arith.constant 0 : i32
    %c0_i32_0 = arith.constant 0 : i32
    return %arg0, %c0_i32 : i32, i32
  }
  func.func @transform_3(%arg0: i32) -> (i32, i32) {
    %c0_i32 = arith.constant 0 : i32
    %c0_i32_0 = arith.constant 0 : i32
    return %arg0, %c0_i32 : i32, i32
  }
}

</mosaic_0001>

<llo_original>
// kernel: tpu_custom_call.1
$region0: #{tpu_custom_call.1}
  #allocation0 [shape = 'u32[]', space=smem, size = 0x4, offset = 0x4, fixed_abs, tag = 'smem constant byte address 0x4 - core index']
  #allocation1 [shape = 'u32[144,128]{1,0:T(1,128)}', space=vmem, size = 0x12000, scoped, tag = 'internal scratch']
  %s0 = inlined_call_operand.hbm [shape: f32[6], index: 0, kind: input, shape index: {}]
  %s1 = inlined_call_operand.vmem [shape: s32[1,256], index: 1, kind: input, shape index: {}]
  %s2 = inlined_call_operand.vmem [shape: f32[2,256], index: 2, kind: input, shape index: {}]
  %s3 = inlined_call_operand.hbm [shape: f32[2,256], index: 3, kind: output, shape index: {}]
  %s4 = sld [smem:[#allocation0]]
  $region26: #{tpu_custom_call.1} parent=0
    _
  %s6 = ssub.s32 1, %s4
  %s7 = scalar_select 0, %s6, %s4
  $region1: #{tpu_custom_call.1} parent=0
    #allocation2 [shape = 'u8[512]{0}', space=smem, size = 0x200, scoped, tag = 'input window, operand 0, single buffered']
    #allocation3 [shape = 's32[1]{0}', space=sflag, size = 0x4, scoped, tag = 'scoped memory for tpu_custom_call.1']
    #allocation4 [shape = 's32[1]{0}', space=sflag, size = 0x4, scoped, tag = 'scoped memory for tpu_custom_call.1']
    #allocation5 [shape = 'u8[2048]{0}', space=vmem, size = 0x800, scoped, tag = 'output window, operand 0, single buffered']
    %8 = vsyncpa [#allocation4], 0
    %9 = vsyncpa [#allocation3], 0
    // Predicated region
    $region2: #{tpu_custom_call.1} parent=1 // pred_check
      _
    $region3: #{tpu_custom_call.1} parent=1 // pred_check_branch
      %11 = sbr.rel (0) target = $region5
    $region4: #{tpu_custom_call.1} parent=1 // pred_region
      %s13 = ssub.s32 16, 16
      %14 = vsyncadd [#allocation4], %s13
      %17 = dma.hbm_to_smem %s0, 16, [#allocation2], [#allocation4]
    $region5: #{tpu_custom_call.1} parent=1 // pred_fallthru
      _
    // Predicated region
    $region6: #{tpu_custom_call.1} parent=1 // pred_check
      _
    $region7: #{tpu_custom_call.1} parent=1 // pred_check_branch
      %19 = sbr.rel (0) target = $region9
    $region8: #{tpu_custom_call.1} parent=1 // pred_region
      _
    $region9: #{tpu_custom_call.1} parent=1 // pred_fallthru
      _
    // Predicated region
    $region10: #{tpu_custom_call.1} parent=1 // pred_check
      _
    $region11: #{tpu_custom_call.1} parent=1 // pred_check_branch
      %21 = sbr.rel (0) target = $region13
    $region12: #{tpu_custom_call.1} parent=1 // pred_region
      _
    $region13: #{tpu_custom_call.1} parent=1 // pred_fallthru
      _
    // Predicated region
    $region14: #{tpu_custom_call.1} parent=1 // pred_check
      _
    $region15: #{tpu_custom_call.1} parent=1 // pred_check_branch
      %23 = sbr.rel (0) target = $region17
    $region16: #{tpu_custom_call.1} parent=1 // pred_region
      %24 = dma.done [#allocation4], 16
    $region17: #{tpu_custom_call.1} parent=1 // pred_fallthru
      _
    %25 = sfence
    %v26 = vld [vmem:[%s2] sm:$0xf]
    %v27 = vlaneseq
    %v28 = vand.u32 %v27, 127
    %v29 = vadd.s32 %v28, 128
    %v30 = vld [vmem:[%s1] sm:$0x3]
    %s31 = sld [smem:[#allocation2]]
    %v32 = vstv %s31
    %v33 = vmul.f32 %v26, %v32
    %v36 = vunpack.c.l.s4 1983009808
    %v37 = vunpack.c.0.s8 %v36
    %v38 = vlaneseq
    %v39 = vshrl.u32 %v38, 7
    %v40 = vsub.s32 %v37, %v39
    %v41 = vrot.slane %v26, %v40
    %v42 = vcombine.high %v41, %v41
    %45 = vrot.lane.b32.xlu0 %v41, 16
    %v46 = vpop.permute.xlu0 %45
    %47 = vrot.lane.b32.xlu0 %v42, 16
    %v48 = vpop.permute.xlu0 %47
    %vm49 = vcmp.lt.s32.totalorder %v28, 16
    %v50 = vsel %vm49, %v46, %v48
    %v51 = vsel %vm49, %v48, %v46
    %vm52 = vcmp.ge.s32.totalorder %v28, 16
    %vm53 = vcmp.ge.s32.totalorder %v29, 16
    %v54 = vsel %vm52, 1, 0
    %v55 = vsel %vm53, 1, 0
    %vm56 = vcmp.eq.s32.totalorder %v54, 1
    %vm57 = vcmp.eq.s32.totalorder %v55, 1
    %v58 = vsel %vm56, %v51, 0.0
    %v59 = vsel %vm57, %v50, 0.0
    %60 = vrot.lane.b32.xlu0 %v41, 1
    %v61 = vpop.permute.xlu0 %60
    %62 = vrot.lane.b32.xlu0 %v42, 1
    %v63 = vpop.permute.xlu0 %62
    %vm64 = vcmp.lt.s32.totalorder %v28, 1
    %v65 = vsel %vm64, %v61, %v63
    %v66 = vsel %vm64, %v63, %v61
    %vm67 = vcmp.ge.s32.totalorder %v30, 1
    %v68 = vsel %vm67, 1, 0
    %v69 = vlaneseq
    %v70 = vshrl.u32 %v69, 7
    %v71 = vsub.s32 0, %v70
    %v72 = vrot.slane %v68, %v71
    %v73 = vlaneseq
    %v74 = vshrl.u32 %v73, 7
    %v75 = vsub.s32 1, %v74
    %v76 = vrot.slane %v68, %v75
    %vm77 = vcmp.eq.s32.totalorder %v72, 1
    %vm78 = vcmp.eq.s32.totalorder %v76, 1
    %v79 = vsel %vm77, %v66, 0.0
    %v80 = vsel %vm78, %v65, 0.0
    %v81 = vadd.f32 %v58, %v79
    %v82 = vadd.f32 %v59, %v80
    %83 = vrot.lane.b32.xlu0 %v41, 127
    %v84 = vpop.permute.xlu0 %83
    %85 = vrot.lane.b32.xlu0 %v42, 127
    %v86 = vpop.permute.xlu0 %85
    %vm87 = vcmp.lt.s32.totalorder %v28, 127
    %v88 = vsel %vm87, %v84, %v86
    %v89 = vsel %vm87, %v86, %v84
    %vm90 = vcmp.lt.s32.totalorder %v30, 15
    %v91 = vsel %vm90, 1, 0
    %v92 = vlaneseq
    %v93 = vshrl.u32 %v92, 7
    %v94 = vsub.s32 0, %v93
    %v95 = vrot.slane %v91, %v94
    %v96 = vlaneseq
    %v97 = vshrl.u32 %v96, 7
    %v98 = vsub.s32 1, %v97
    %v99 = vrot.slane %v91, %v98
    %vm100 = vcmp.eq.s32.totalorder %v95, 1
    %vm101 = vcmp.eq.s32.totalorder %v99, 1
    %v102 = vsel %vm100, %v88, 0.0
    %v103 = vsel %vm101, %v89, 0.0
    %v104 = vadd.f32 %v81, %v102
    %v105 = vadd.f32 %v82, %v103
    %106 = vrot.lane.b32.xlu0 %v41, 112
    %v107 = vpop.permute.xlu0 %106
    %108 = vrot.lane.b32.xlu0 %v42, 112
    %v109 = vpop.permute.xlu0 %108
    %vm110 = vcmp.lt.s32.totalorder %v28, 112
    %v111 = vsel %vm110, %v107, %v109
    %v112 = vsel %vm110, %v109, %v107
    %vm113 = vcmp.lt.s32.totalorder %v28, 240
    %vm114 = vcmp.lt.s32.totalorder %v29, 240
    %v115 = vsel %vm113, 1, 0
    %v116 = vsel %vm114, 1, 0
    %vm117 = vcmp.eq.s32.totalorder %v115, 1
    %vm118 = vcmp.eq.s32.totalorder %v116, 1
    %v119 = vsel %vm117, %v111, 0.0
    %v120 = vsel %vm118, %v112, 0.0
    %v121 = vadd.f32 %v104, %v119
    %v122 = vadd.f32 %v105, %v120
    %s123 = sld [smem:[#allocation2 + $0x1]]
    %v124 = vstv %s123
    %v125 = vmul.f32 %v121, %v124
    %v126 = vmul.f32 %v122, %v124
    %v129 = vcombine.low %v125, %v126
    %v131 = vunpack.c.l.s4 1983009808
    %v132 = vunpack.c.0.s8 %v131
    %v133 = vlaneseq
    %v134 = vshrl.u32 %v133, 7
    %v135 = vsub.s32 %v132, %v134
    %v136 = vrot.slane %v129, %v135
    %v138 = vadd.f32 %v33, %v136
    %139 = vrot.lane.b32.xlu0 %v41, 17
    %v140 = vpop.permute.xlu0 %139
    %141 = vrot.lane.b32.xlu0 %v42, 17
    %v142 = vpop.permute.xlu0 %141
    %vm143 = vcmp.lt.s32.totalorder %v28, 17
    %v144 = vsel %vm143, %v140, %v142
    %v145 = vsel %vm143, %v142, %v140
    %vm146 = vcmp.ge.s32.totalorder %v28, 17
    %vm147 = vcmp.ge.s32.totalorder %v29, 17
    %v148 = vsel %vm146, 1, 0
    %v149 = vsel %vm147, 1, 0
    %v150 = vcombine.low %v148, %v149
    %v152 = vunpack.c.l.s4 1966171168
    %v153 = vunpack.c.0.s8 %v152
    %v154 = vlaneseq
    %v155 = vshrl.u32 %v154, 7
    %v156 = vsub.s32 %v153, %v155
    %v157 = vrot.slane %v150, %v156
    %v159 = vunpack.c.l.s4 1966171168
    %v160 = vunpack.c.0.s8 %v159
    %v161 = vlaneseq
    %v162 = vshrl.u32 %v161, 7
    %v163 = vsub.s32 %v160, %v162
    %v164 = vrot.slane %v157, %v163
    %vm165 = vcmp.ne.s32.totalorder %v164, 0
    %vm166 = vmand %vm67, %vm165
    %v167 = vsel %vm166, 1, 0
    %v168 = vlaneseq
    %v169 = vshrl.u32 %v168, 7
    %v170 = vsub.s32 0, %v169
    %v171 = vrot.slane %v167, %v170
    %v172 = vlaneseq
    %v173 = vshrl.u32 %v172, 7
    %v174 = vsub.s32 1, %v173
    %v175 = vrot.slane %v167, %v174
    %vm176 = vcmp.eq.s32.totalorder %v171, 1
    %vm177 = vcmp.eq.s32.totalorder %v175, 1
    %v178 = vsel %vm176, %v145, 0.0
    %v179 = vsel %vm177, %v144, 0.0
    %180 = vrot.lane.b32.xlu0 %v41, 15
    %v181 = vpop.permute.xlu0 %180
    %182 = vrot.lane.b32.xlu0 %v42, 15
    %v183 = vpop.permute.xlu0 %182
    %vm184 = vcmp.lt.s32.totalorder %v28, 15
    %v185 = vsel %vm184, %v181, %v183
    %v186 = vsel %vm184, %v183, %v181
    %vm187 = vcmp.ge.s32.totalorder %v28, 15
    %vm188 = vcmp.ge.s32.totalorder %v29, 15
    %v189 = vsel %vm187, 1, 0
    %v190 = vsel %vm188, 1, 0
    %v191 = vcombine.low %v189, %v190
    %v193 = vunpack.c.l.s4 1966171168
    %v194 = vunpack.c.0.s8 %v193
    %v195 = vlaneseq
    %v196 = vshrl.u32 %v195, 7
    %v197 = vsub.s32 %v194, %v196
    %v198 = vrot.slane %v191, %v197
    %v200 = vunpack.c.l.s4 1966171168
    %v201 = vunpack.c.0.s8 %v200
    %v202 = vlaneseq
    %v203 = vshrl.u32 %v202, 7
    %v204 = vsub.s32 %v201, %v203
    %v205 = vrot.slane %v198, %v204
    %vm206 = vcmp.ne.s32.totalorder %v205, 0
    %vm207 = vmand %vm90, %vm206
    %v208 = vsel %vm207, 1, 0
    %v209 = vlaneseq
    %v210 = vshrl.u32 %v209, 7
    %v211 = vsub.s32 0, %v210
    %v212 = vrot.slane %v208, %v211
    %v213 = vlaneseq
    %v214 = vshrl.u32 %v213, 7
    %v215 = vsub.s32 1, %v214
    %v216 = vrot.slane %v208, %v215
    %vm217 = vcmp.eq.s32.totalorder %v212, 1
    %vm218 = vcmp.eq.s32.totalorder %v216, 1
    %v219 = vsel %vm217, %v186, 0.0
    %v220 = vsel %vm218, %v185, 0.0
    %v221 = vadd.f32 %v178, %v219
    %v222 = vadd.f32 %v179, %v220
    %223 = vrot.lane.b32.xlu0 %v41, 113
    %v224 = vpop.permute.xlu0 %223
    %225 = vrot.lane.b32.xlu0 %v42, 113
    %v226 = vpop.permute.xlu0 %225
    %vm227 = vcmp.lt.s32.totalorder %v28, 113
    %v228 = vsel %vm227, %v224, %v226
    %v229 = vsel %vm227, %v226, %v224
    %vm230 = vcmp.lt.s32.totalorder %v28, 241
    %vm231 = vcmp.lt.s32.totalorder %v29, 241
    %v232 = vsel %vm230, 1, 0
    %v233 = vsel %vm231, 1, 0
    %v234 = vcombine.low %v232, %v233
    %v236 = vunpack.c.l.s4 1966171168
    %v237 = vunpack.c.0.s8 %v236
    %v238 = vlaneseq
    %v239 = vshrl.u32 %v238, 7
    %v240 = vsub.s32 %v237, %v239
    %v241 = vrot.slane %v234, %v240
    %v243 = vunpack.c.l.s4 1966171168
    %v244 = vunpack.c.0.s8 %v243
    %v245 = vlaneseq
    %v246 = vshrl.u32 %v245, 7
    %v247 = vsub.s32 %v244, %v246
    %v248 = vrot.slane %v241, %v247
    %vm249 = vcmp.ne.s32.totalorder %v248, 0
    %vm250 = vmand %vm67, %vm249
    %v251 = vsel %vm250, 1, 0
    %v252 = vlaneseq
    %v253 = vshrl.u32 %v252, 7
    %v254 = vsub.s32 0, %v253
    %v255 = vrot.slane %v251, %v254
    %v256 = vlaneseq
    %v257 = vshrl.u32 %v256, 7
    %v258 = vsub.s32 1, %v257
    %v259 = vrot.slane %v251, %v258
    %vm260 = vcmp.eq.s32.totalorder %v255, 1
    %vm261 = vcmp.eq.s32.totalorder %v259, 1
    %v262 = vsel %vm260, %v228, 0.0
    %v263 = vsel %vm261, %v229, 0.0
    %v264 = vadd.f32 %v221, %v262
    %v265 = vadd.f32 %v222, %v263
    %266 = vrot.lane.b32.xlu0 %v41, 111
    %v267 = vpop.permute.xlu0 %266
    %268 = vrot.lane.b32.xlu0 %v42, 111
    %v269 = vpop.permute.xlu0 %268
    %vm270 = vcmp.lt.s32.totalorder %v28, 111
    %v271 = vsel %vm270, %v267, %v269
    %v272 = vsel %vm270, %v269, %v267
    %vm273 = vcmp.lt.s32.totalorder %v28, 239
    %vm274 = vcmp.lt.s32.totalorder %v29, 239
    %v275 = vsel %vm273, 1, 0
    %v276 = vsel %vm274, 1, 0
    %v277 = vcombine.low %v275, %v276
    %v279 = vunpack.c.l.s4 1966171168
    %v280 = vunpack.c.0.s8 %v279
    %v281 = vlaneseq
    %v282 = vshrl.u32 %v281, 7
    %v283 = vsub.s32 %v280, %v282
    %v284 = vrot.slane %v277, %v283
    %v286 = vunpack.c.l.s4 1966171168
    %v287 = vunpack.c.0.s8 %v286
    %v288 = vlaneseq
    %v289 = vshrl.u32 %v288, 7
    %v290 = vsub.s32 %v287, %v289
    %v291 = vrot.slane %v284, %v290
    %vm292 = vcmp.ne.s32.totalorder %v291, 0
    %vm293 = vmand %vm90, %vm292
    %v294 = vsel %vm293, 1, 0
    %v295 = vlaneseq
    %v296 = vshrl.u32 %v295, 7
    %v297 = vsub.s32 0, %v296
    %v298 = vrot.slane %v294, %v297
    %v299 = vlaneseq
    %v300 = vshrl.u32 %v299, 7
    %v301 = vsub.s32 1, %v300
    %v302 = vrot.slane %v294, %v301
    %vm303 = vcmp.eq.s32.totalorder %v298, 1
    %vm304 = vcmp.eq.s32.totalorder %v302, 1
    %v305 = vsel %vm303, %v271, 0.0
    %v306 = vsel %vm304, %v272, 0.0
    %v307 = vadd.f32 %v264, %v305
    %v308 = vadd.f32 %v265, %v306
    %s309 = sld [smem:[#allocation2 + $0x2]]
    %v310 = vstv %s309
    %v311 = vmul.f32 %v307, %v310
    %v312 = vmul.f32 %v308, %v310
    %v315 = vcombine.low %v311, %v312
    %v317 = vunpack.c.l.s4 1983009808
    %v318 = vunpack.c.0.s8 %v317
    %v319 = vlaneseq
    %v320 = vshrl.u32 %v319, 7
    %v321 = vsub.s32 %v318, %v320
    %v322 = vrot.slane %v315, %v321
    %v324 = vadd.f32 %v138, %v322
    %325 = vrot.lane.b32.xlu0 %v41, 32
    %v326 = vpop.permute.xlu0 %325
    %327 = vrot.lane.b32.xlu0 %v42, 32
    %v328 = vpop.permute.xlu0 %327
    %vm329 = vcmp.lt.s32.totalorder %v28, 32
    %v330 = vsel %vm329, %v326, %v328
    %v331 = vsel %vm329, %v328, %v326
    %vm332 = vcmp.ge.s32.totalorder %v28, 32
    %vm333 = vcmp.ge.s32.totalorder %v29, 32
    %v334 = vsel %vm332, 1, 0
    %v335 = vsel %vm333, 1, 0
    %vm336 = vcmp.eq.s32.totalorder %v334, 1
    %vm337 = vcmp.eq.s32.totalorder %v335, 1
    %v338 = vsel %vm336, %v331, 0.0
    %v339 = vsel %vm337, %v330, 0.0
    %340 = vrot.lane.b32.xlu0 %v41, 2
    %v341 = vpop.permute.xlu0 %340
    %342 = vrot.lane.b32.xlu0 %v42, 2
    %v343 = vpop.permute.xlu0 %342
    %vm344 = vcmp.lt.s32.totalorder %v28, 2
    %v345 = vsel %vm344, %v341, %v343
    %v346 = vsel %vm344, %v343, %v341
    %vm347 = vcmp.ge.s32.totalorder %v30, 2
    %v348 = vsel %vm347, 1, 0
    %v349 = vlaneseq
    %v350 = vshrl.u32 %v349, 7
    %v351 = vsub.s32 0, %v350
    %v352 = vrot.slane %v348, %v351
    %v353 = vlaneseq
    %v354 = vshrl.u32 %v353, 7
    %v355 = vsub.s32 1, %v354
    %v356 = vrot.slane %v348, %v355
    %vm357 = vcmp.eq.s32.totalorder %v352, 1
    %vm358 = vcmp.eq.s32.totalorder %v356, 1
    %v359 = vsel %vm357, %v346, 0.0
    %v360 = vsel %vm358, %v345, 0.0
    %v361 = vadd.f32 %v338, %v359
    %v362 = vadd.f32 %v339, %v360
    %363 = vrot.lane.b32.xlu0 %v41, 126
    %v364 = vpop.permute.xlu0 %363
    %365 = vrot.lane.b32.xlu0 %v42, 126
    %v366 = vpop.permute.xlu0 %365
    %vm367 = vcmp.lt.s32.totalorder %v28, 126
    %v368 = vsel %vm367, %v364, %v366
    %v369 = vsel %vm367, %v366, %v364
    %vm370 = vcmp.lt.s32.totalorder %v30, 14
    %v371 = vsel %vm370, 1, 0
    %v372 = vlaneseq
    %v373 = vshrl.u32 %v372, 7
    %v374 = vsub.s32 0, %v373
    %v375 = vrot.slane %v371, %v374
    %v376 = vlaneseq
    %v377 = vshrl.u32 %v376, 7
    %v378 = vsub.s32 1, %v377
    %v379 = vrot.slane %v371, %v378
    %vm380 = vcmp.eq.s32.totalorder %v375, 1
    %vm381 = vcmp.eq.s32.totalorder %v379, 1
    %v382 = vsel %vm380, %v368, 0.0
    %v383 = vsel %vm381, %v369, 0.0
    %v384 = vadd.f32 %v361, %v382
    %v385 = vadd.f32 %v362, %v383
    %386 = vrot.lane.b32.xlu0 %v41, 96
    %v387 = vpop.permute.xlu0 %386
    %388 = vrot.lane.b32.xlu0 %v42, 96
    %v389 = vpop.permute.xlu0 %388
    %vm390 = vcmp.lt.s32.totalorder %v28, 96
    %v391 = vsel %vm390, %v387, %v389
    %v392 = vsel %vm390, %v389, %v387
    %vm393 = vcmp.lt.s32.totalorder %v28, 224
    %vm394 = vcmp.lt.s32.totalorder %v29, 224
    %v395 = vsel %vm393, 1, 0
    %v396 = vsel %vm394, 1, 0
    %vm397 = vcmp.eq.s32.totalorder %v395, 1
    %vm398 = vcmp.eq.s32.totalorder %v396, 1
    %v399 = vsel %vm397, %v391, 0.0
    %v400 = vsel %vm398, %v392, 0.0
    %v401 = vadd.f32 %v384, %v399
    %v402 = vadd.f32 %v385, %v400
    %s403 = sld [smem:[#allocation2 + $0x3]]
    %v404 = vstv %s403
    %v405 = vmul.f32 %v401, %v404
    %v406 = vmul.f32 %v402, %v404
    %v409 = vcombine.low %v405, %v406
    %v411 = vunpack.c.l.s4 1983009808
    %v412 = vunpack.c.0.s8 %v411
    %v413 = vlaneseq
    %v414 = vshrl.u32 %v413, 7
    %v415 = vsub.s32 %v412, %v414
    %v416 = vrot.slane %v409, %v415
    %v418 = vadd.f32 %v324, %v416
    %419 = vrot.lane.b32.xlu0 %v41, 33
    %v420 = vpop.permute.xlu0 %419
    %421 = vrot.lane.b32.xlu0 %v42, 33
    %v422 = vpop.permute.xlu0 %421
    %vm423 = vcmp.lt.s32.totalorder %v28, 33
    %v424 = vsel %vm423, %v420, %v422
    %v425 = vsel %vm423, %v422, %v420
    %vm426 = vcmp.ge.s32.totalorder %v28, 33
    %vm427 = vcmp.ge.s32.totalorder %v29, 33
    %v428 = vsel %vm426, 1, 0
    %v429 = vsel %vm427, 1, 0
    %v430 = vcombine.low %v428, %v429
    %v432 = vunpack.c.l.s4 1966171168
    %v433 = vunpack.c.0.s8 %v432
    %v434 = vlaneseq
    %v435 = vshrl.u32 %v434, 7
    %v436 = vsub.s32 %v433, %v435
    %v437 = vrot.slane %v430, %v436
    %v439 = vunpack.c.l.s4 1966171168
    %v440 = vunpack.c.0.s8 %v439
    %v441 = vlaneseq
    %v442 = vshrl.u32 %v441, 7
    %v443 = vsub.s32 %v440, %v442
    %v444 = vrot.slane %v437, %v443
    %vm445 = vcmp.ne.s32.totalorder %v444, 0
    %vm446 = vmand %vm67, %vm445
    %v447 = vsel %vm446, 1, 0
    %v448 = vlaneseq
    %v449 = vshrl.u32 %v448, 7
    %v450 = vsub.s32 0, %v449
    %v451 = vrot.slane %v447, %v450
    %v452 = vlaneseq
    %v453 = vshrl.u32 %v452, 7
    %v454 = vsub.s32 1, %v453
    %v455 = vrot.slane %v447, %v454
    %vm456 = vcmp.eq.s32.totalorder %v451, 1
    %vm457 = vcmp.eq.s32.totalorder %v455, 1
    %v458 = vsel %vm456, %v425, 0.0
    %v459 = vsel %vm457, %v424, 0.0
    %460 = vrot.lane.b32.xlu0 %v41, 31
    %v461 = vpop.permute.xlu0 %460
    %462 = vrot.lane.b32.xlu0 %v42, 31
    %v463 = vpop.permute.xlu0 %462
    %vm464 = vcmp.lt.s32.totalorder %v28, 31
    %v465 = vsel %vm464, %v461, %v463
    %v466 = vsel %vm464, %v463, %v461
    %vm467 = vcmp.ge.s32.totalorder %v28, 31
    %vm468 = vcmp.ge.s32.totalorder %v29, 31
    %v469 = vsel %vm467, 1, 0
    %v470 = vsel %vm468, 1, 0
    %v471 = vcombine.low %v469, %v470
    %v473 = vunpack.c.l.s4 1966171168
    %v474 = vunpack.c.0.s8 %v473
    %v475 = vlaneseq
    %v476 = vshrl.u32 %v475, 7
    %v477 = vsub.s32 %v474, %v476
    %v478 = vrot.slane %v471, %v477
    %v480 = vunpack.c.l.s4 1966171168
    %v481 = vunpack.c.0.s8 %v480
    %v482 = vlaneseq
    %v483 = vshrl.u32 %v482, 7
    %v484 = vsub.s32 %v481, %v483
    %v485 = vrot.slane %v478, %v484
    %vm486 = vcmp.ne.s32.totalorder %v485, 0
    %vm487 = vmand %vm90, %vm486
    %v488 = vsel %vm487, 1, 0
    %v489 = vlaneseq
    %v490 = vshrl.u32 %v489, 7
    %v491 = vsub.s32 0, %v490
    %v492 = vrot.slane %v488, %v491
    %v493 = vlaneseq
    %v494 = vshrl.u32 %v493, 7
    %v495 = vsub.s32 1, %v494
    %v496 = vrot.slane %v488, %v495
    %vm497 = vcmp.eq.s32.totalorder %v492, 1
    %vm498 = vcmp.eq.s32.totalorder %v496, 1
    %v499 = vsel %vm497, %v466, 0.0
    %v500 = vsel %vm498, %v465, 0.0
    %v501 = vadd.f32 %v458, %v499
    %v502 = vadd.f32 %v459, %v500
    %503 = vrot.lane.b32.xlu0 %v41, 18
    %v504 = vpop.permute.xlu0 %503
    %505 = vrot.lane.b32.xlu0 %v42, 18
    %v506 = vpop.permute.xlu0 %505
    %vm507 = vcmp.lt.s32.totalorder %v28, 18
    %v508 = vsel %vm507, %v504, %v506
    %v509 = vsel %vm507, %v506, %v504
    %vm510 = vcmp.ge.s32.totalorder %v28, 18
    %vm511 = vcmp.ge.s32.totalorder %v29, 18
    %v512 = vsel %vm510, 1, 0
    %v513 = vsel %vm511, 1, 0
    %v514 = vcombine.low %v512, %v513
    %v516 = vunpack.c.l.s4 1966171168
    %v517 = vunpack.c.0.s8 %v516
    %v518 = vlaneseq
    %v519 = vshrl.u32 %v518, 7
    %v520 = vsub.s32 %v517, %v519
    %v521 = vrot.slane %v514, %v520
    %v523 = vunpack.c.l.s4 1966171168
    %v524 = vunpack.c.0.s8 %v523
    %v525 = vlaneseq
    %v526 = vshrl.u32 %v525, 7
    %v527 = vsub.s32 %v524, %v526
    %v528 = vrot.slane %v521, %v527
    %vm529 = vcmp.ne.s32.totalorder %v528, 0
    %vm530 = vmand %vm347, %vm529
    %v531 = vsel %vm530, 1, 0
    %v532 = vlaneseq
    %v533 = vshrl.u32 %v532, 7
    %v534 = vsub.s32 0, %v533
    %v535 = vrot.slane %v531, %v534
    %v536 = vlaneseq
    %v537 = vshrl.u32 %v536, 7
    %v538 = vsub.s32 1, %v537
    %v539 = vrot.slane %v531, %v538
    %vm540 = vcmp.eq.s32.totalorder %v535, 1
    %vm541 = vcmp.eq.s32.totalorder %v539, 1
    %v542 = vsel %vm540, %v509, 0.0
    %v543 = vsel %vm541, %v508, 0.0
    %v544 = vadd.f32 %v501, %v542
    %v545 = vadd.f32 %v502, %v543
    %546 = vrot.lane.b32.xlu0 %v41, 14
    %v547 = vpop.permute.xlu0 %546
    %548 = vrot.lane.b32.xlu0 %v42, 14
    %v549 = vpop.permute.xlu0 %548
    %vm550 = vcmp.lt.s32.totalorder %v28, 14
    %v551 = vsel %vm550, %v547, %v549
    %v552 = vsel %vm550, %v549, %v547
    %vm553 = vcmp.ge.s32.totalorder %v28, 14
    %vm554 = vcmp.ge.s32.totalorder %v29, 14
    %v555 = vsel %vm553, 1, 0
    %v556 = vsel %vm554, 1, 0
    %v557 = vcombine.low %v555, %v556
    %v559 = vunpack.c.l.s4 1966171168
    %v560 = vunpack.c.0.s8 %v559
    %v561 = vlaneseq
    %v562 = vshrl.u32 %v561, 7
    %v563 = vsub.s32 %v560, %v562
    %v564 = vrot.slane %v557, %v563
    %v566 = vunpack.c.l.s4 1966171168
    %v567 = vunpack.c.0.s8 %v566
    %v568 = vlaneseq
    %v569 = vshrl.u32 %v568, 7
    %v570 = vsub.s32 %v567, %v569
    %v571 = vrot.slane %v564, %v570
    %vm572 = vcmp.ne.s32.totalorder %v571, 0
    %vm573 = vmand %vm370, %vm572
    %v574 = vsel %vm573, 1, 0
    %v575 = vlaneseq
    %v576 = vshrl.u32 %v575, 7
    %v577 = vsub.s32 0, %v576
    %v578 = vrot.slane %v574, %v577
    %v579 = vlaneseq
    %v580 = vshrl.u32 %v579, 7
    %v581 = vsub.s32 1, %v580
    %v582 = vrot.slane %v574, %v581
    %vm583 = vcmp.eq.s32.totalorder %v578, 1
    %vm584 = vcmp.eq.s32.totalorder %v582, 1
    %v585 = vsel %vm583, %v552, 0.0
    %v586 = vsel %vm584, %v551, 0.0
    %v587 = vadd.f32 %v544, %v585
    %v588 = vadd.f32 %v545, %v586
    %589 = vrot.lane.b32.xlu0 %v41, 114
    %v590 = vpop.permute.xlu0 %589
    %591 = vrot.lane.b32.xlu0 %v42, 114
    %v592 = vpop.permute.xlu0 %591
    %vm593 = vcmp.lt.s32.totalorder %v28, 114
    %v594 = vsel %vm593, %v590, %v592
    %v595 = vsel %vm593, %v592, %v590
    %vm596 = vcmp.lt.s32.totalorder %v28, 242
    %vm597 = vcmp.lt.s32.totalorder %v29, 242
    %v598 = vsel %vm596, 1, 0
    %v599 = vsel %vm597, 1, 0
    %v600 = vcombine.low %v598, %v599
    %v602 = vunpack.c.l.s4 1966171168
    %v603 = vunpack.c.0.s8 %v602
    %v604 = vlaneseq
    %v605 = vshrl.u32 %v604, 7
    %v606 = vsub.s32 %v603, %v605
    %v607 = vrot.slane %v600, %v606
    %v609 = vunpack.c.l.s4 1966171168
    %v610 = vunpack.c.0.s8 %v609
    %v611 = vlaneseq
    %v612 = vshrl.u32 %v611, 7
    %v613 = vsub.s32 %v610, %v612
    %v614 = vrot.slane %v607, %v613
    %vm615 = vcmp.ne.s32.totalorder %v614, 0
    %vm616 = vmand %vm347, %vm615
    %v617 = vsel %vm616, 1, 0
    %v618 = vlaneseq
    %v619 = vshrl.u32 %v618, 7
    %v620 = vsub.s32 0, %v619
    %v621 = vrot.slane %v617, %v620
    %v622 = vlaneseq
    %v623 = vshrl.u32 %v622, 7
    %v624 = vsub.s32 1, %v623
    %v625 = vrot.slane %v617, %v624
    %vm626 = vcmp.eq.s32.totalorder %v621, 1
    %vm627 = vcmp.eq.s32.totalorder %v625, 1
    %v628 = vsel %vm626, %v594, 0.0
    %v629 = vsel %vm627, %v595, 0.0
    %v630 = vadd.f32 %v587, %v628
    %v631 = vadd.f32 %v588, %v629
    %632 = vrot.lane.b32.xlu0 %v41, 110
    %v633 = vpop.permute.xlu0 %632
    %634 = vrot.lane.b32.xlu0 %v42, 110
    %v635 = vpop.permute.xlu0 %634
    %vm636 = vcmp.lt.s32.totalorder %v28, 110
    %v637 = vsel %vm636, %v633, %v635
    %v638 = vsel %vm636, %v635, %v633
    %vm639 = vcmp.lt.s32.totalorder %v28, 238
    %vm640 = vcmp.lt.s32.totalorder %v29, 238
    %v641 = vsel %vm639, 1, 0
    %v642 = vsel %vm640, 1, 0
    %v643 = vcombine.low %v641, %v642
    %v645 = vunpack.c.l.s4 1966171168
    %v646 = vunpack.c.0.s8 %v645
    %v647 = vlaneseq
    %v648 = vshrl.u32 %v647, 7
    %v649 = vsub.s32 %v646, %v648
    %v650 = vrot.slane %v643, %v649
    %v652 = vunpack.c.l.s4 1966171168
    %v653 = vunpack.c.0.s8 %v652
    %v654 = vlaneseq
    %v655 = vshrl.u32 %v654, 7
    %v656 = vsub.s32 %v653, %v655
    %v657 = vrot.slane %v650, %v656
    %vm658 = vcmp.ne.s32.totalorder %v657, 0
    %vm659 = vmand %vm370, %vm658
    %v660 = vsel %vm659, 1, 0
    %v661 = vlaneseq
    %v662 = vshrl.u32 %v661, 7
    %v663 = vsub.s32 0, %v662
    %v664 = vrot.slane %v660, %v663
    %v665 = vlaneseq
    %v666 = vshrl.u32 %v665, 7
    %v667 = vsub.s32 1, %v666
    %v668 = vrot.slane %v660, %v667
    %vm669 = vcmp.eq.s32.totalorder %v664, 1
    %vm670 = vcmp.eq.s32.totalorder %v668, 1
    %v671 = vsel %vm669, %v637, 0.0
    %v672 = vsel %vm670, %v638, 0.0
    %v673 = vadd.f32 %v630, %v671
    %v674 = vadd.f32 %v631, %v672
    %675 = vrot.lane.b32.xlu0 %v41, 97
    %v676 = vpop.permute.xlu0 %675
    %677 = vrot.lane.b32.xlu0 %v42, 97
    %v678 = vpop.permute.xlu0 %677
    %vm679 = vcmp.lt.s32.totalorder %v28, 97
    %v680 = vsel %vm679, %v676, %v678
    %v681 = vsel %vm679, %v678, %v676
    %vm682 = vcmp.lt.s32.totalorder %v28, 225
    %vm683 = vcmp.lt.s32.totalorder %v29, 225
    %v684 = vsel %vm682, 1, 0
    %v685 = vsel %vm683, 1, 0
    %v686 = vcombine.low %v684, %v685
    %v688 = vunpack.c.l.s4 1966171168
    %v689 = vunpack.c.0.s8 %v688
    %v690 = vlaneseq
    %v691 = vshrl.u32 %v690, 7
    %v692 = vsub.s32 %v689, %v691
    %v693 = vrot.slane %v686, %v692
    %v695 = vunpack.c.l.s4 1966171168
    %v696 = vunpack.c.0.s8 %v695
    %v697 = vlaneseq
    %v698 = vshrl.u32 %v697, 7
    %v699 = vsub.s32 %v696, %v698
    %v700 = vrot.slane %v693, %v699
    %vm701 = vcmp.ne.s32.totalorder %v700, 0
    %vm702 = vmand %vm67, %vm701
    %v703 = vsel %vm702, 1, 0
    %v704 = vlaneseq
    %v705 = vshrl.u32 %v704, 7
    %v706 = vsub.s32 0, %v705
    %v707 = vrot.slane %v703, %v706
    %v708 = vlaneseq
    %v709 = vshrl.u32 %v708, 7
    %v710 = vsub.s32 1, %v709
    %v711 = vrot.slane %v703, %v710
    %vm712 = vcmp.eq.s32.totalorder %v707, 1
    %vm713 = vcmp.eq.s32.totalorder %v711, 1
    %v714 = vsel %vm712, %v680, 0.0
    %v715 = vsel %vm713, %v681, 0.0
    %v716 = vadd.f32 %v673, %v714
    %v717 = vadd.f32 %v674, %v715
    %718 = vrot.lane.b32.xlu0 %v41, 95
    %v719 = vpop.permute.xlu0 %718
    %720 = vrot.lane.b32.xlu0 %v42, 95
    %v721 = vpop.permute.xlu0 %720
    %vm722 = vcmp.lt.s32.totalorder %v28, 95
    %v723 = vsel %vm722, %v719, %v721
    %v724 = vsel %vm722, %v721, %v719
    %vm725 = vcmp.lt.s32.totalorder %v28, 223
    %vm726 = vcmp.lt.s32.totalorder %v29, 223
    %v727 = vsel %vm725, 1, 0
    %v728 = vsel %vm726, 1, 0
    %v729 = vcombine.low %v727, %v728
    %v731 = vunpack.c.l.s4 1966171168
    %v732 = vunpack.c.0.s8 %v731
    %v733 = vlaneseq
    %v734 = vshrl.u32 %v733, 7
    %v735 = vsub.s32 %v732, %v734
    %v736 = vrot.slane %v729, %v735
    %v738 = vunpack.c.l.s4 1966171168
    %v739 = vunpack.c.0.s8 %v738
    %v740 = vlaneseq
    %v741 = vshrl.u32 %v740, 7
    %v742 = vsub.s32 %v739, %v741
    %v743 = vrot.slane %v736, %v742
    %vm744 = vcmp.ne.s32.totalorder %v743, 0
    %vm745 = vmand %vm90, %vm744
    %v746 = vsel %vm745, 1, 0
    %v747 = vlaneseq
    %v748 = vshrl.u32 %v747, 7
    %v749 = vsub.s32 0, %v748
    %v750 = vrot.slane %v746, %v749
    %v751 = vlaneseq
    %v752 = vshrl.u32 %v751, 7
    %v753 = vsub.s32 1, %v752
    %v754 = vrot.slane %v746, %v753
    %vm755 = vcmp.eq.s32.totalorder %v750, 1
    %vm756 = vcmp.eq.s32.totalorder %v754, 1
    %v757 = vsel %vm755, %v723, 0.0
    %v758 = vsel %vm756, %v724, 0.0
    %v759 = vadd.f32 %v716, %v757
    %v760 = vadd.f32 %v717, %v758
    %s761 = sld [smem:[#allocation2 + $0x4]]
    %v762 = vstv %s761
    %v763 = vmul.f32 %v759, %v762
    %v764 = vmul.f32 %v760, %v762
    %v767 = vcombine.low %v763, %v764
    %v769 = vunpack.c.l.s4 1983009808
    %v770 = vunpack.c.0.s8 %v769
    %v771 = vlaneseq
    %v772 = vshrl.u32 %v771, 7
    %v773 = vsub.s32 %v770, %v772
    %v774 = vrot.slane %v767, %v773
    %v776 = vadd.f32 %v418, %v774
    %777 = vrot.lane.b32.xlu0 %v41, 34
    %v778 = vpop.permute.xlu0 %777
    %779 = vrot.lane.b32.xlu0 %v42, 34
    %v780 = vpop.permute.xlu0 %779
    %vm781 = vcmp.lt.s32.totalorder %v28, 34
    %v782 = vsel %vm781, %v778, %v780
    %v783 = vsel %vm781, %v780, %v778
    %vm784 = vcmp.ge.s32.totalorder %v28, 34
    %vm785 = vcmp.ge.s32.totalorder %v29, 34
    %v786 = vsel %vm784, 1, 0
    %v787 = vsel %vm785, 1, 0
    %v788 = vcombine.low %v786, %v787
    %v790 = vunpack.c.l.s4 1966171168
    %v791 = vunpack.c.0.s8 %v790
    %v792 = vlaneseq
    %v793 = vshrl.u32 %v792, 7
    %v794 = vsub.s32 %v791, %v793
    %v795 = vrot.slane %v788, %v794
    %v797 = vunpack.c.l.s4 1966171168
    %v798 = vunpack.c.0.s8 %v797
    %v799 = vlaneseq
    %v800 = vshrl.u32 %v799, 7
    %v801 = vsub.s32 %v798, %v800
    %v802 = vrot.slane %v795, %v801
    %vm803 = vcmp.ne.s32.totalorder %v802, 0
    %vm804 = vmand %vm347, %vm803
    %v805 = vsel %vm804, 1, 0
    %v806 = vlaneseq
    %v807 = vshrl.u32 %v806, 7
    %v808 = vsub.s32 0, %v807
    %v809 = vrot.slane %v805, %v808
    %v810 = vlaneseq
    %v811 = vshrl.u32 %v810, 7
    %v812 = vsub.s32 1, %v811
    %v813 = vrot.slane %v805, %v812
    %vm814 = vcmp.eq.s32.totalorder %v809, 1
    %vm815 = vcmp.eq.s32.totalorder %v813, 1
    %v816 = vsel %vm814, %v783, 0.0
    %v817 = vsel %vm815, %v782, 0.0
    %818 = vrot.lane.b32.xlu0 %v41, 30
    %v819 = vpop.permute.xlu0 %818
    %820 = vrot.lane.b32.xlu0 %v42, 30
    %v821 = vpop.permute.xlu0 %820
    %vm822 = vcmp.lt.s32.totalorder %v28, 30
    %v823 = vsel %vm822, %v819, %v821
    %v824 = vsel %vm822, %v821, %v819
    %vm825 = vcmp.ge.s32.totalorder %v28, 30
    %vm826 = vcmp.ge.s32.totalorder %v29, 30
    %v827 = vsel %vm825, 1, 0
    %v828 = vsel %vm826, 1, 0
    %v829 = vcombine.low %v827, %v828
    %v831 = vunpack.c.l.s4 1966171168
    %v832 = vunpack.c.0.s8 %v831
    %v833 = vlaneseq
    %v834 = vshrl.u32 %v833, 7
    %v835 = vsub.s32 %v832, %v834
    %v836 = vrot.slane %v829, %v835
    %v838 = vunpack.c.l.s4 1966171168
    %v839 = vunpack.c.0.s8 %v838
    %v840 = vlaneseq
    %v841 = vshrl.u32 %v840, 7
    %v842 = vsub.s32 %v839, %v841
    %v843 = vrot.slane %v836, %v842
    %vm844 = vcmp.ne.s32.totalorder %v843, 0
    %vm845 = vmand %vm370, %vm844
    %v846 = vsel %vm845, 1, 0
    %v847 = vlaneseq
    %v848 = vshrl.u32 %v847, 7
    %v849 = vsub.s32 0, %v848
    %v850 = vrot.slane %v846, %v849
    %v851 = vlaneseq
    %v852 = vshrl.u32 %v851, 7
    %v853 = vsub.s32 1, %v852
    %v854 = vrot.slane %v846, %v853
    %vm855 = vcmp.eq.s32.totalorder %v850, 1
    %vm856 = vcmp.eq.s32.totalorder %v854, 1
    %v857 = vsel %vm855, %v824, 0.0
    %v858 = vsel %vm856, %v823, 0.0
    %v859 = vadd.f32 %v816, %v857
    %v860 = vadd.f32 %v817, %v858
    %861 = vrot.lane.b32.xlu0 %v41, 98
    %v862 = vpop.permute.xlu0 %861
    %863 = vrot.lane.b32.xlu0 %v42, 98
    %v864 = vpop.permute.xlu0 %863
    %vm865 = vcmp.lt.s32.totalorder %v28, 98
    %v866 = vsel %vm865, %v862, %v864
    %v867 = vsel %vm865, %v864, %v862
    %vm868 = vcmp.lt.s32.totalorder %v28, 226
    %vm869 = vcmp.lt.s32.totalorder %v29, 226
    %v870 = vsel %vm868, 1, 0
    %v871 = vsel %vm869, 1, 0
    %v872 = vcombine.low %v870, %v871
    %v874 = vunpack.c.l.s4 1966171168
    %v875 = vunpack.c.0.s8 %v874
    %v876 = vlaneseq
    %v877 = vshrl.u32 %v876, 7
    %v878 = vsub.s32 %v875, %v877
    %v879 = vrot.slane %v872, %v878
    %v881 = vunpack.c.l.s4 1966171168
    %v882 = vunpack.c.0.s8 %v881
    %v883 = vlaneseq
    %v884 = vshrl.u32 %v883, 7
    %v885 = vsub.s32 %v882, %v884
    %v886 = vrot.slane %v879, %v885
    %vm887 = vcmp.ne.s32.totalorder %v886, 0
    %vm888 = vmand %vm347, %vm887
    %v889 = vsel %vm888, 1, 0
    %v890 = vlaneseq
    %v891 = vshrl.u32 %v890, 7
    %v892 = vsub.s32 0, %v891
    %v893 = vrot.slane %v889, %v892
    %v894 = vlaneseq
    %v895 = vshrl.u32 %v894, 7
    %v896 = vsub.s32 1, %v895
    %v897 = vrot.slane %v889, %v896
    %vm898 = vcmp.eq.s32.totalorder %v893, 1
    %vm899 = vcmp.eq.s32.totalorder %v897, 1
    %v900 = vsel %vm898, %v866, 0.0
    %v901 = vsel %vm899, %v867, 0.0
    %v902 = vadd.f32 %v859, %v900
    %v903 = vadd.f32 %v860, %v901
    %904 = vrot.lane.b32.xlu0 %v41, 94
    %v905 = vpop.permute.xlu0 %904
    %906 = vrot.lane.b32.xlu0 %v42, 94
    %v907 = vpop.permute.xlu0 %906
    %vm908 = vcmp.lt.s32.totalorder %v28, 94
    %v909 = vsel %vm908, %v905, %v907
    %v910 = vsel %vm908, %v907, %v905
    %vm911 = vcmp.lt.s32.totalorder %v28, 222
    %vm912 = vcmp.lt.s32.totalorder %v29, 222
    %v913 = vsel %vm911, 1, 0
    %v914 = vsel %vm912, 1, 0
    %v915 = vcombine.low %v913, %v914
    %v917 = vunpack.c.l.s4 1966171168
    %v918 = vunpack.c.0.s8 %v917
    %v919 = vlaneseq
    %v920 = vshrl.u32 %v919, 7
    %v921 = vsub.s32 %v918, %v920
    %v922 = vrot.slane %v915, %v921
    %v924 = vunpack.c.l.s4 1966171168
    %v925 = vunpack.c.0.s8 %v924
    %v926 = vlaneseq
    %v927 = vshrl.u32 %v926, 7
    %v928 = vsub.s32 %v925, %v927
    %v929 = vrot.slane %v922, %v928
    %vm930 = vcmp.ne.s32.totalorder %v929, 0
    %vm931 = vmand %vm370, %vm930
    %v932 = vsel %vm931, 1, 0
    %v933 = vlaneseq
    %v934 = vshrl.u32 %v933, 7
    %v935 = vsub.s32 0, %v934
    %v936 = vrot.slane %v932, %v935
    %v937 = vlaneseq
    %v938 = vshrl.u32 %v937, 7
    %v939 = vsub.s32 1, %v938
    %v940 = vrot.slane %v932, %v939
    %vm941 = vcmp.eq.s32.totalorder %v936, 1
    %vm942 = vcmp.eq.s32.totalorder %v940, 1
    %v943 = vsel %vm941, %v909, 0.0
    %v944 = vsel %vm942, %v910, 0.0
    %v945 = vadd.f32 %v902, %v943
    %v946 = vadd.f32 %v903, %v944
    %s947 = sld [smem:[#allocation2 + $0x5]]
    %v948 = vstv %s947
    %v949 = vmul.f32 %v945, %v948
    %v950 = vmul.f32 %v946, %v948
    %v953 = vcombine.low %v949, %v950
    %v955 = vunpack.c.l.s4 1983009808
    %v956 = vunpack.c.0.s8 %v955
    %v957 = vlaneseq
    %v958 = vshrl.u32 %v957, 7
    %v959 = vsub.s32 %v956, %v958
    %v960 = vrot.slane %v953, %v959
    %v962 = vadd.f32 %v776, %v960
    %963 = vst [vmem:[#allocation5] sm:$0xf] %v962
    // Predicated region
    $region18: #{tpu_custom_call.1} parent=1 // pred_check
      _
    $region19: #{tpu_custom_call.1} parent=1 // pred_check_branch
      %965 = sbr.rel (0) target = $region21
    $region20: #{tpu_custom_call.1} parent=1 // pred_region
      %s967 = ssub.s32 64, 64
      %968 = vsyncadd [#allocation3], %s967
      %s970 = sshll.u32 [#allocation5], 4
      %s971 = int_to_ptr.vmem [resolvable:$true] %s970
      %973 = dma.vmem_to_hbm [thread:$0]  %s971, 64, %s3, [#allocation3]
    $region21: #{tpu_custom_call.1} parent=1 // pred_fallthru
      _
    // Predicated region
    $region22: #{tpu_custom_call.1} parent=1 // pred_check
      _
    $region23: #{tpu_custom_call.1} parent=1 // pred_check_branch
      %975 = sbr.rel (0) target = $region25
    $region24: #{tpu_custom_call.1} parent=1 // pred_region
      %976 = dma.done [#allocation3], 64
    $region25: #{tpu_custom_call.1} parent=1 // pred_fallthru
      _
    %977 = vsyncpa [#allocation3], 1
    %978 = vsyncpa [#allocation4], 1

</llo_original>
